<compile_context>
chip_gen: v5e
topology: v5e:2x2
jax: 0.10.0
libtpu: 0.0.40
codegen_flags: <defaults>
</compile_context>

<pallas_src>
import functools
import math

import jax
import jax.numpy as jnp
from jax import lax
from jax.experimental import pallas as pl
from jax.experimental.pallas import tpu as pltpu


def _round_up(x, m):
    return -(-x // m) * m


# ----------------------------------------------------------------------------------------------
# Fast path: embedding table is VMEM-resident; gather = in-VMEM dynamic row loads.
# ----------------------------------------------------------------------------------------------
def posenc_resident_kernel(idx_ref, emb_ref, pe_ref, out_ref, *, rows_per_tile, unroll):
    """idx_ref : SMEM (n_tiles, rows_per_tile) int32  (scalar prefetch)
       emb_ref : VMEM (V, D) f32   full table; constant block index => DMAed once, stays resident
       pe_ref  : VMEM (1, D)  f32  pe[batch_size] row (torch quirk)
       out_ref : VMEM (rows_per_tile, D) f32
    """
    t = pl.program_id(0)
    pe_row = pe_ref[...]                                   # (1, D), hoisted out of the loop

    def body(i, carry):
        row = idx_ref[t, i]                                # scalar read from SMEM
        out_ref[pl.ds(i, 1), :] = (emb_ref[pl.ds(row, 1), :] + pe_row).astype(out_ref.dtype)
        return carry

    lax.fori_loop(0, rows_per_tile, body, 0, unroll=unroll)


# ----------------------------------------------------------------------------------------------
# Fallback path: table stays in HBM; manual multi-buffered row-gather DMA pipeline.
# ----------------------------------------------------------------------------------------------
def posenc_gather_kernel(idx_ref, emb_hbm, pe_ref, out_ref, gbuf, sems, *,
                         rows_per_tile, nbuf, unroll):
    """idx_ref : SMEM (n_tiles, rows_per_tile) int32
       emb_hbm : HBM  (V, D) f32   (never VMEM-resident)
       pe_ref  : VMEM (1, D) f32
       out_ref : VMEM (rows_per_tile, D) f32
       gbuf    : VMEM (rows_per_tile, D) f32   DMA landing buffer
       sems    : DMA semaphores (nbuf,)
    """
    t = pl.program_id(0)

    def start(i, row):
        pltpu.make_async_copy(emb_hbm.at[row], gbuf.at[i], sems.at[i % nbuf]).start()

    def wait(i, row):
        # Exact same descriptor as start() (row re-read from SMEM) -- no placeholder slice.
        pltpu.make_async_copy(emb_hbm.at[row], gbuf.at[i], sems.at[i % nbuf]).wait()

    n_prime = min(nbuf, rows_per_tile)

    def prime_body(i, c):                                  # prime the pipeline
        start(i, idx_ref[t, i])
        return c
    lax.fori_loop(0, n_prime, prime_body, 0)

    if rows_per_tile > nbuf:                               # steady state
        def steady_body(i, c):
            # Read both row indices BEFORE the wait: .wait() breaks SMEM sst->sld forwarding.
            row_next = idx_ref[t, i]
            row_done = idx_ref[t, i - nbuf]
            wait(i - nbuf, row_done)
            start(i, row_next)
            return c
        lax.fori_loop(nbuf, rows_per_tile, steady_body, 0, unroll=unroll)

    def drain_body(i, c):                                  # drain
        wait(i, idx_ref[t, i])
        return c
    lax.fori_loop(max(0, rows_per_tile - nbuf), rows_per_tile, drain_body, 0)

    # x + pe[batch_size]  (broadcast the single PE row over all gathered rows).
    out_ref[...] = (gbuf[...] + pe_ref[...]).astype(out_ref.dtype)
    # TODO(synk): a (2, rows_per_tile, D) landing buffer with cross-tile prefetch would also hide
    # the per-tile drain latency; not implemented here.


# ----------------------------------------------------------------------------------------------
# Wrapper
# ----------------------------------------------------------------------------------------------
def positional_encoding_forward(indices, emb_weight, pe, *, rows_per_tile=None,
                                dma_depth=32, vmem_budget_bytes=None):
    """indices: (B, L) int, emb_weight: (V, D) f32, pe: (max_len, D) f32 -> (B, L, D) f32."""
    B, L = indices.shape
    V, D = emb_weight.shape
    N = B * L
    bytes_per_el = 4  # f32.  TODO(synk): bf16 table/PE storage would halve HBM/VMEM traffic and
    #                   double the resident-vocab ceiling (compute still f32 on v5e); kept f32
    #                   here for exact parity with the torch reference.

    # torch: x = x + self.pe[:, x.size(0), :]   (PE row indexed with the *batch size* B).
    # NOTE: JAX clamps this lookup if B >= max_len instead of raising like torch would.
    pe_row = pe[B][None, :].astype(jnp.float32)                        # (1, D)

    # Flatten + clamp token ids (torch nn.Embedding raises on OOB; clamping keeps loads/DMAs
    # in-bounds).
    flat_idx = jnp.clip(indices.reshape(N).astype(jnp.int32), 0, V - 1)

    # Generation-aware VMEM budget: v7x has 64 MiB physical, v5e/v6e have 128 MiB.
    if vmem_budget_bytes is None:
        try:
            phys = int(getattr(pltpu.get_tpu_info(), "vmem_capacity_bytes", 0)) or (64 << 20)
        except Exception:
            phys = 64 << 20                                            # conservative (v7x)
        vmem_budget_bytes = int(phys * 0.65)

    # Tile sizing: big tiles amortize per-grid-step overhead, but keep >= 2 steps when possible
    # so both v7x TensorCores get work; bound by the VMEM budget.
    if rows_per_tile is None:
        rows_per_tile = min(512, max(8, _round_up(pl.cdiv(_round_up(max(N, 8), 8), 2), 8)))
    rows_per_tile = max(8, _round_up(rows_per_tile, 8))
    max_rows_by_vmem = max(8, (vmem_budget_bytes // max(1, 4 * D * bytes_per_el)) // 8 * 8)
    rows_per_tile = min(rows_per_tile, max_rows_by_vmem)

    n_total = _round_up(N, rows_per_tile)
    n_tiles = n_total // rows_per_tile
    if n_total != N:
        flat_idx = jnp.concatenate([flat_idx, jnp.zeros((n_total - N,), jnp.int32)])
    idx2d = flat_idx.reshape(n_tiles, rows_per_tile)   # 2-D SMEM layout: no next_pow2 blow-up

    table_bytes = V * D * bytes_per_el
    tile_bytes = rows_per_tile * D * bytes_per_el
    pe_bytes = D * bytes_per_el
    # Resident-path VMEM: the table block is double-buffered by the pipeline machinery (constant
    # index_map => only one DMA ever issued, but two buffers reserved) + double-buffered out tiles.
    resident_ok = (2 * table_bytes + 2 * tile_bytes + 2 * pe_bytes) <= vmem_budget_bytes

    if resident_ok:
        needed = 2 * table_bytes + 2 * tile_bytes + 2 * pe_bytes
        kernel = functools.partial(posenc_resident_kernel, rows_per_tile=rows_per_tile,
                                   unroll=min(8, rows_per_tile))
        in_specs = [
            pl.BlockSpec((V, D), lambda t, idx: (0, 0)),   # full table; DMAed once, resident
            pl.BlockSpec((1, D), lambda t, idx: (0, 0)),   # selected PE row
        ]
        scratch_shapes = []
    else:
        nbuf = max(1, min(dma_depth, rows_per_tile))
        nbuf = 1 << (nbuf.bit_length() - 1)                # power of two, <= rows_per_tile
        needed = 3 * tile_bytes + 2 * pe_bytes
        kernel = functools.partial(posenc_gather_kernel, rows_per_tile=rows_per_tile,
                                   nbuf=nbuf, unroll=4)
        in_specs = [
            pl.BlockSpec(memory_space=pl.ANY),             # table stays in HBM
            pl.BlockSpec((1, D), lambda t, idx: (0, 0)),
        ]
        scratch_shapes = [
            pltpu.VMEM((rows_per_tile, D), jnp.float32),   # gather landing buffer
            pltpu.SemaphoreType.DMA((nbuf,)),
        ]

    # Explicit VMEM limit: v5e's scoped default is only 16 MiB of its 128 MiB physical.
    vmem_limit = int(max(needed + (8 << 20), 32 << 20))

    out_flat = pl.pallas_call(
        kernel,
        out_shape=jax.ShapeDtypeStruct((n_total, D), jnp.float32),
        grid_spec=pltpu.PrefetchScalarGridSpec(
            num_scalar_prefetch=1,                         # idx2d -> SMEM
            grid=(n_tiles,),
            in_specs=in_specs,
            out_specs=pl.BlockSpec((rows_per_tile, D), lambda t, idx: (t, 0)),
            scratch_shapes=scratch_shapes,
        ),
        compiler_params=pltpu.CompilerParams(
            dimension_semantics=("parallel",),
            vmem_limit_bytes=vmem_limit,
        ),
    )(idx2d, emb_weight.astype(jnp.float32), pe_row)

    # TODO(synk): self.dropout / Emb_layer.drop are identity here (eval-mode / p forced to 0 for
    # the word embedding); torch-RNG dropout is not reproduced.
    return out_flat[:N].reshape(B, L, D)


def make_params(vocab_size, dim, max_len, zero_padding, key):
    # Emb_layer.random_embedding: uniform(-sqrt(3/dim), sqrt(3/dim)) per row.
    scale = math.sqrt(3.0 / dim)
    emb_weight = jax.random.uniform(
        key, (vocab_size, dim), dtype=jnp.float32, minval=-scale, maxval=scale)
    if zero_padding:
        # Emb_layer.set_zeros([0, 1, 2, 3])
        emb_weight = emb_weight.at[0:4, :].set(0.0)

    # PositionalEncoding PE buffer.
    position = jnp.arange(max_len, dtype=jnp.float32)[:, None]                  # (max_len, 1)
    div_term = jnp.exp(jnp.arange(0, dim, 2, dtype=jnp.float32)
                       * (-math.log(10000.0) / dim))                            # (dim/2,)
    pe = jnp.zeros((max_len, dim), dtype=jnp.float32)
    pe = pe.at[:, 0::2].set(jnp.sin(position * div_term))
    pe = pe.at[:, 1::2].set(jnp.cos(position * div_term))
    return emb_weight, pe


if __name__ == "__main__":
    B, L = 2, 8              # (batch, length)
    V, D = 64, 128           # vocab size, embedding dim (multiple of 128 -> lane-dense output)
    MAX_LEN = 16
    ZERO_PADDING = True

    key = jax.random.PRNGKey(0)
    k_emb, k_idx = jax.random.split(key)

    emb_weight, pe = make_params(V, D, MAX_LEN, ZERO_PADDING, k_emb)
    indices = jax.random.randint(k_idx, (B, L), minval=0, maxval=V, dtype=jnp.int32)

    # Pure-JAX reference of the exact torch forward semantics.
    ref = emb_weight[indices] + pe[B][None, None, :]

    # Fast path: table (32 KiB) becomes VMEM-resident; gather = in-VMEM dynamic row loads.
    out = positional_encoding_forward(indices, emb_weight, pe)
    out = jax.block_until_ready(out)
    assert out.shape == (B, L, D)
    assert jnp.allclose(out, ref, atol=1e-6, rtol=1e-6), "resident-path mismatch vs reference"

    # Also exercise the big-vocab HBM-gather fallback path (forced via a zero VMEM budget).
    out_hbm = positional_encoding_forward(indices, emb_weight, pe, vmem_budget_bytes=0)
    out_hbm = jax.block_until_ready(out_hbm)
    assert jnp.allclose(out_hbm, ref, atol=1e-6, rtol=1e-6), "HBM-gather-path mismatch vs reference"

    print("KERNEL_OK")
</pallas_src>

<mosaic_0001>
module attributes {stable_mosaic.version = 11 : i64} {
  func.func @posenc_resident_kernel(%arg0: i32, %arg1: memref<2x8xi32, #tpu.memory_space<smem>>, %arg2: memref<64x128xf32, #tpu.memory_space<vmem>>, %arg3: memref<1x128xf32, #tpu.memory_space<vmem>>, %arg4: memref<8x128xf32, #tpu.memory_space<vmem>>) attributes {dimension_semantics = [#tpu.dimension_semantics<parallel>], iteration_bounds = array<i64: 2>, scalar_prefetch = 1 : i64, scratch_operands = 0 : i64, tpu.core_type = #tpu.core_type<tc>, window_params = [{pipeline_mode = #tpu.pipeline_mode<synchronous>, transform_indices = @transform_0, window_bounds = array<i64: 64, 128>}, {pipeline_mode = #tpu.pipeline_mode<synchronous>, transform_indices = @transform_1, window_bounds = array<i64: 1, 128>}, {transform_indices = @transform_2, window_bounds = array<i64: 8, 128>}]} {
    %c0 = arith.constant 0 : index
    %c0_0 = arith.constant 0 : index
    %0 = vector.load %arg3[%c0, %c0_0] : memref<1x128xf32, #tpu.memory_space<vmem>>, vector<1x128xf32>
    %c0_i32 = arith.constant 0 : i32
    %1 = arith.index_cast %arg0 : i32 to index
    %2 = arith.index_cast %c0_i32 : i32 to index
    %3 = memref.load %arg1[%1, %2] : memref<2x8xi32, #tpu.memory_space<smem>>
    %4 = arith.index_cast %3 : i32 to index
    %c0_1 = arith.constant 0 : index
    %5 = vector.load %arg2[%4, %c0_1] : memref<64x128xf32, #tpu.memory_space<vmem>>, vector<1x128xf32>
    %6 = arith.addf %5, %0 : vector<1x128xf32>
    %7 = arith.index_cast %c0_i32 : i32 to index
    %c0_2 = arith.constant 0 : index
    %8 = vector.load %arg4[%7, %c0_2] : memref<8x128xf32, #tpu.memory_space<vmem>>, vector<1x128xf32>
    tpu.vector_store %arg4[%7, %c0_2], %6 {strides = array<i32>} : memref<8x128xf32, #tpu.memory_space<vmem>>, vector<1x128xf32>,
    %c1_i32 = arith.constant 1 : i32
    %9 = arith.index_cast %arg0 : i32 to index
    %10 = arith.index_cast %c1_i32 : i32 to index
    %11 = memref.load %arg1[%9, %10] : memref<2x8xi32, #tpu.memory_space<smem>>
    %12 = arith.index_cast %11 : i32 to index
    %c0_3 = arith.constant 0 : index
    %13 = vector.load %arg2[%12, %c0_3] : memref<64x128xf32, #tpu.memory_space<vmem>>, vector<1x128xf32>
    %14 = arith.addf %13, %0 : vector<1x128xf32>
    %15 = arith.index_cast %c1_i32 : i32 to index
    %c0_4 = arith.constant 0 : index
    %16 = vector.load %arg4[%15, %c0_4] : memref<8x128xf32, #tpu.memory_space<vmem>>, vector<1x128xf32>
    tpu.vector_store %arg4[%15, %c0_4], %14 {strides = array<i32>} : memref<8x128xf32, #tpu.memory_space<vmem>>, vector<1x128xf32>,
    %c2_i32 = arith.constant 2 : i32
    %17 = arith.index_cast %arg0 : i32 to index
    %18 = arith.index_cast %c2_i32 : i32 to index
    %19 = memref.load %arg1[%17, %18] : memref<2x8xi32, #tpu.memory_space<smem>>
    %20 = arith.index_cast %19 : i32 to index
    %c0_5 = arith.constant 0 : index
    %21 = vector.load %arg2[%20, %c0_5] : memref<64x128xf32, #tpu.memory_space<vmem>>, vector<1x128xf32>
    %22 = arith.addf %21, %0 : vector<1x128xf32>
    %23 = arith.index_cast %c2_i32 : i32 to index
    %c0_6 = arith.constant 0 : index
    %24 = vector.load %arg4[%23, %c0_6] : memref<8x128xf32, #tpu.memory_space<vmem>>, vector<1x128xf32>
    tpu.vector_store %arg4[%23, %c0_6], %22 {strides = array<i32>} : memref<8x128xf32, #tpu.memory_space<vmem>>, vector<1x128xf32>,
    %c3_i32 = arith.constant 3 : i32
    %25 = arith.index_cast %arg0 : i32 to index
    %26 = arith.index_cast %c3_i32 : i32 to index
    %27 = memref.load %arg1[%25, %26] : memref<2x8xi32, #tpu.memory_space<smem>>
    %28 = arith.index_cast %27 : i32 to index
    %c0_7 = arith.constant 0 : index
    %29 = vector.load %arg2[%28, %c0_7] : memref<64x128xf32, #tpu.memory_space<vmem>>, vector<1x128xf32>
    %30 = arith.addf %29, %0 : vector<1x128xf32>
    %31 = arith.index_cast %c3_i32 : i32 to index
    %c0_8 = arith.constant 0 : index
    %32 = vector.load %arg4[%31, %c0_8] : memref<8x128xf32, #tpu.memory_space<vmem>>, vector<1x128xf32>
    tpu.vector_store %arg4[%31, %c0_8], %30 {strides = array<i32>} : memref<8x128xf32, #tpu.memory_space<vmem>>, vector<1x128xf32>,
    %c4_i32 = arith.constant 4 : i32
    %33 = arith.index_cast %arg0 : i32 to index
    %34 = arith.index_cast %c4_i32 : i32 to index
    %35 = memref.load %arg1[%33, %34] : memref<2x8xi32, #tpu.memory_space<smem>>
    %36 = arith.index_cast %35 : i32 to index
    %c0_9 = arith.constant 0 : index
    %37 = vector.load %arg2[%36, %c0_9] : memref<64x128xf32, #tpu.memory_space<vmem>>, vector<1x128xf32>
    %38 = arith.addf %37, %0 : vector<1x128xf32>
    %39 = arith.index_cast %c4_i32 : i32 to index
    %c0_10 = arith.constant 0 : index
    %40 = vector.load %arg4[%39, %c0_10] : memref<8x128xf32, #tpu.memory_space<vmem>>, vector<1x128xf32>
    tpu.vector_store %arg4[%39, %c0_10], %38 {strides = array<i32>} : memref<8x128xf32, #tpu.memory_space<vmem>>, vector<1x128xf32>,
    %c5_i32 = arith.constant 5 : i32
    %41 = arith.index_cast %arg0 : i32 to index
    %42 = arith.index_cast %c5_i32 : i32 to index
    %43 = memref.load %arg1[%41, %42] : memref<2x8xi32, #tpu.memory_space<smem>>
    %44 = arith.index_cast %43 : i32 to index
    %c0_11 = arith.constant 0 : index
    %45 = vector.load %arg2[%44, %c0_11] : memref<64x128xf32, #tpu.memory_space<vmem>>, vector<1x128xf32>
    %46 = arith.addf %45, %0 : vector<1x128xf32>
    %47 = arith.index_cast %c5_i32 : i32 to index
    %c0_12 = arith.constant 0 : index
    %48 = vector.load %arg4[%47, %c0_12] : memref<8x128xf32, #tpu.memory_space<vmem>>, vector<1x128xf32>
    tpu.vector_store %arg4[%47, %c0_12], %46 {strides = array<i32>} : memref<8x128xf32, #tpu.memory_space<vmem>>, vector<1x128xf32>,
    %c6_i32 = arith.constant 6 : i32
    %49 = arith.index_cast %arg0 : i32 to index
    %50 = arith.index_cast %c6_i32 : i32 to index
    %51 = memref.load %arg1[%49, %50] : memref<2x8xi32, #tpu.memory_space<smem>>
    %52 = arith.index_cast %51 : i32 to index
    %c0_13 = arith.constant 0 : index
    %53 = vector.load %arg2[%52, %c0_13] : memref<64x128xf32, #tpu.memory_space<vmem>>, vector<1x128xf32>
    %54 = arith.addf %53, %0 : vector<1x128xf32>
    %55 = arith.index_cast %c6_i32 : i32 to index
    %c0_14 = arith.constant 0 : index
    %56 = vector.load %arg4[%55, %c0_14] : memref<8x128xf32, #tpu.memory_space<vmem>>, vector<1x128xf32>
    tpu.vector_store %arg4[%55, %c0_14], %54 {strides = array<i32>} : memref<8x128xf32, #tpu.memory_space<vmem>>, vector<1x128xf32>,
    %c7_i32 = arith.constant 7 : i32
    %57 = arith.index_cast %arg0 : i32 to index
    %58 = arith.index_cast %c7_i32 : i32 to index
    %59 = memref.load %arg1[%57, %58] : memref<2x8xi32, #tpu.memory_space<smem>>
    %60 = arith.index_cast %59 : i32 to index
    %c0_15 = arith.constant 0 : index
    %61 = vector.load %arg2[%60, %c0_15] : memref<64x128xf32, #tpu.memory_space<vmem>>, vector<1x128xf32>
    %62 = arith.addf %61, %0 : vector<1x128xf32>
    %63 = arith.index_cast %c7_i32 : i32 to index
    %c0_16 = arith.constant 0 : index
    %64 = vector.load %arg4[%63, %c0_16] : memref<8x128xf32, #tpu.memory_space<vmem>>, vector<1x128xf32>
    tpu.vector_store %arg4[%63, %c0_16], %62 {strides = array<i32>} : memref<8x128xf32, #tpu.memory_space<vmem>>, vector<1x128xf32>,
    %c8_i32 = arith.constant 8 : i32
    return
  }
  func.func @transform_0(%arg0: i32, %arg1: memref<2x8xi32, #tpu.memory_space<smem>>) -> (i32, i32) {
    %c0_i32 = arith.constant 0 : i32
    %c0_i32_0 = arith.constant 0 : i32
    %c0_i32_1 = arith.constant 0 : i32
    return %c0_i32, %c0_i32_0 : i32, i32
  }
  func.func @transform_1(%arg0: i32, %arg1: memref<2x8xi32, #tpu.memory_space<smem>>) -> (i32, i32) {
    %c0_i32 = arith.constant 0 : i32
    %c0_i32_0 = arith.constant 0 : i32
    %c0_i32_1 = arith.constant 0 : i32
    return %c0_i32, %c0_i32_0 : i32, i32
  }
  func.func @transform_2(%arg0: i32, %arg1: memref<2x8xi32, #tpu.memory_space<smem>>) -> (i32, i32) {
    %c0_i32 = arith.constant 0 : i32
    %c0_i32_0 = arith.constant 0 : i32
    return %arg0, %c0_i32 : i32, i32
  }
}

</mosaic_0001>

<llo_original>
// kernel: tpu_custom_call.1
$region0: #{tpu_custom_call.1}
  #allocation0 [shape = 'u32[]', space=smem, size = 0x4, offset = 0x4, fixed_abs, tag = 'smem constant byte address 0x4 - core index']
  #allocation1 [shape = 'u32[72,128]{1,0:T(1,128)}', space=vmem, size = 0x9000, scoped, tag = 'internal scratch']
  #allocation2 [shape = 's32[1]{0}', space=sflag, size = 0x4, scoped, tag = 'scoped memory for tpu_custom_call.1']
  #allocation3 [shape = 'u8[1024]{0}', space=smem, size = 0x400, scoped, tag = 'prefetched SMEM operand 0']
  %s0 = inlined_call_operand.hbm [shape: s32[2,8], index: 0, kind: input, shape index: {}]
  %s1 = inlined_call_operand.hbm [shape: f32[64,128], index: 1, kind: input, shape index: {}]
  %s2 = inlined_call_operand.vmem [shape: f32[1,128], index: 2, kind: input, shape index: {}]
  %s3 = inlined_call_operand.hbm [shape: f32[16,128], index: 3, kind: output, shape index: {}]
  %s4 = sld [smem:[#allocation0]]
  $region45: #{tpu_custom_call.1} parent=0
    _
  %s6 = ssub.s32 1, %s4
  %s7 = scalar_select 0, %s6, %s4
  %s9 = sshll.u32 %s0, 4
  %s10 = int_to_ptr.hbm [resolvable:$true] %s9
  %12 = dma.hbm_to_smem %s10, 32, [#allocation3], [#allocation2]
  %14 = dma.done [#allocation2], 32
  %15 = sfence
  $region1: #{tpu_custom_call.1} parent=0
    #allocation4 [shape = 'u8[32768]{0}', space=vmem, size = 0x8000, scoped, tag = 'input window, operand 1, single buffered']
    #allocation5 [shape = 's32[2]{0}', space=sflag, size = 0x8, scoped, tag = 'scoped memory for tpu_custom_call.1']
    #allocation6 [shape = 's32[2]{0}', space=sflag, size = 0x8, scoped, tag = 'scoped memory for tpu_custom_call.1']
    #allocation7 [shape = 'u8[8192]{0}', space=vmem, size = 0x2000, scoped, tag = 'output window, operand 0']
    %16 = vsyncpa [#allocation5], 0
    %17 = vsyncpa [#allocation6], 0
    %s18 = scalar_lea.sflag [#allocation6], 1
    %19 = vsyncpa %s18, 0
    loop: start=0, step=1, limit=4
    $region2: #{tpu_custom_call.1} parent=1 // loop_pre_header
      _
    $region3: #{tpu_custom_call.1} parent=1 // loop_header
      %s21 = sphi 0, %s25
      %p22 = scmp.ge.s32.totalorder %s21, 4
      %s29 = sphi 0, %s29
      %s31 = sphi 0, %s29
      %s32 = sphi 0, %s31
      %s46 = sphi 0, %s32
      %s50 = sphi 0, %s50
      %s52 = sphi 0, %s50
      %s53 = sphi 0, %s52
      %s67 = sphi 0, %s53
      %s73 = sphi 0, %s75
      %s76 = sphi 0, %s73
      %s77 = sphi 0, %s76
      %s93 = sphi 0, %s77
    $region4: #{tpu_custom_call.1} parent=1 // loop_header_branch
      %24 = sbr.rel (%p22) target = $region8
    $region5: #{tpu_custom_call.1} parent=1 // loop_body
      %s26 = ssub.s32 %s21, 1
      %s27 = ssub.s32 %s21, 2
      %s28 = sadd.s32 %s21, 1
      %s30 = sadd.s32 %s29, 1
      %p33 = scmp.eq.s32.totalorder %s21, 1
      %p34 = scmp.ne.s32.totalorder %s29, %s31
      %p35 = scmp.eq.s32.totalorder %s21, 0
      %p36 = por %p34, %p35
      %p37 = scmp.ne.s32.totalorder %s29, %s31
      %p38 = scmp.eq.s32.totalorder %s26, 1
      %p39 = por %p37, %p38
      %p40 = scmp.ne.s32.totalorder %s31, %s32
      %p41 = scmp.eq.s32.totalorder %s26, 0
      %p42 = por %p40, %p41
      %p43 = scmp.ne.s32.totalorder %s31, %s32
      %p44 = scmp.eq.s32.totalorder %s27, 1
      %p45 = por %p43, %p44
      %p47 = scmp.ne.s32.totalorder %s32, %s46
      %p48 = scmp.eq.s32.totalorder %s27, 0
      %p49 = por %p47, %p48
      %s51 = sadd.s32 %s50, 1
      %p54 = scmp.eq.s32.totalorder %s21, 1
      %p55 = scmp.ne.s32.totalorder %s50, %s52
      %p56 = scmp.eq.s32.totalorder %s21, 0
      %p57 = por %p55, %p56
      %p58 = scmp.ne.s32.totalorder %s50, %s52
      %p59 = scmp.eq.s32.totalorder %s26, 1
      %p60 = por %p58, %p59
      %p61 = scmp.ne.s32.totalorder %s52, %s53
      %p62 = scmp.eq.s32.totalorder %s26, 0
      %p63 = por %p61, %p62
      %p64 = scmp.ne.s32.totalorder %s52, %s53
      %p65 = scmp.eq.s32.totalorder %s27, 1
      %p66 = por %p64, %p65
      %p68 = scmp.ne.s32.totalorder %s53, %s67
      %p69 = scmp.eq.s32.totalorder %s27, 0
      %p70 = por %p68, %p69
      %s71 = ssub.s32 %s21, %s28
      %p72 = scmp.eq.s32.totalorder %s71, 0
      %s74 = sadd.s32 %s73, 1
      %s75 = scalar_select %p72, %s73, %s74
      %p78 = pneg %p72
      %p79 = scmp.eq.s32.totalorder %s21, 1
      %p80 = por %p78, %p79
      %p81 = scmp.ne.s32.totalorder %s73, %s76
      %p82 = scmp.eq.s32.totalorder %s21, 0
      %p83 = por %p81, %p82
      %p84 = scmp.ne.s32.totalorder %s73, %s76
      %p85 = scmp.eq.s32.totalorder %s26, 1
      %p86 = por %p84, %p85
      %p87 = scmp.ne.s32.totalorder %s76, %s77
      %p88 = scmp.eq.s32.totalorder %s26, 0
      %p89 = por %p87, %p88
      %p90 = scmp.ne.s32.totalorder %s76, %s77
      %p91 = scmp.eq.s32.totalorder %s27, 1
      %p92 = por %p90, %p91
      %p94 = scmp.ne.s32.totalorder %s77, %s93
      %p95 = scmp.eq.s32.totalorder %s27, 0
      %p96 = por %p94, %p95
      %p97 = scmp.le.s32.totalorder 1, %s21
      %p98 = scmp.lt.s32.totalorder %s21, 3
      %p99 = pnand %p97, %p98
      %p100 = pneg %p99
      // Predicated region
      $region9: #{tpu_custom_call.1} parent=5 // pred_check
        _
      $region10: #{tpu_custom_call.1} parent=5 // pred_check_branch
        %102 = sbr.rel (%p99) target = $region12
      $region11: #{tpu_custom_call.1} parent=5 // pred_region
        %s103 = ssub.s32 %s21, 1
        // Predicated region
        $region13: #{tpu_custom_call.1} parent=11 // pred_check
          %p104 = pneg %p42
        $region14: #{tpu_custom_call.1} parent=11 // pred_check_branch
          %106 = sbr.rel (%p104) target = $region16
        $region15: #{tpu_custom_call.1} parent=11 // pred_region
          %108 = vsyncadd [#allocation5], 0
          %s109 = sshll.u32 %s1, 4
          %s110 = int_to_ptr.hbm [resolvable:$true] %s109
          %s111 = sshll.u32 [#allocation4], 4
          %s112 = int_to_ptr.vmem [resolvable:$true] %s111
          %117 = dma.hbm_to_vmem [thread:$0]  %s110, 1024, %s112, [#allocation5], 128, 128, 8
        $region16: #{tpu_custom_call.1} parent=11 // pred_fallthru
          _
        // Predicated region
        $region17: #{tpu_custom_call.1} parent=11 // pred_check
          %p118 = pneg %p63
        $region18: #{tpu_custom_call.1} parent=11 // pred_check_branch
          %120 = sbr.rel (%p118) target = $region20
        $region19: #{tpu_custom_call.1} parent=11 // pred_region
          _
        $region20: #{tpu_custom_call.1} parent=11 // pred_fallthru
          _
      $region12: #{tpu_custom_call.1} parent=5 // pred_fallthru
        _
      %p121 = scmp.lt.s32.totalorder %s21, 2
      // Predicated region
      $region21: #{tpu_custom_call.1} parent=5 // pred_check
        %p122 = pneg %p121
      $region22: #{tpu_custom_call.1} parent=5 // pred_check_branch
        %124 = sbr.rel (%p122) target = $region24
      $region23: #{tpu_custom_call.1} parent=5 // pred_region
        _
      $region24: #{tpu_custom_call.1} parent=5 // pred_fallthru
        _
      %p125 = scmp.le.s32.totalorder 1, %s21
      %p126 = scmp.lt.s32.totalorder %s21, 3
      %p127 = pnand %p125, %p126
      %p128 = pneg %p127
      // Predicated region
      $region25: #{tpu_custom_call.1} parent=5 // pred_check
        _
      $region26: #{tpu_custom_call.1} parent=5 // pred_check_branch
        %130 = sbr.rel (%p127) target = $region28
      $region27: #{tpu_custom_call.1} parent=5 // pred_region
        %s131 = ssub.s32 %s21, 1
        // Predicated region
        $region29: #{tpu_custom_call.1} parent=27 // pred_check
          %p132 = pneg %p42
        $region30: #{tpu_custom_call.1} parent=27 // pred_check_branch
          %134 = sbr.rel (%p132) target = $region32
        $region31: #{tpu_custom_call.1} parent=27 // pred_region
          %136 = dma.done [#allocation5], 1024
        $region32: #{tpu_custom_call.1} parent=27 // pred_fallthru
          _
        %p137 = pneg %p42
        %p138 = pneg %p39
        %p139 = pneg %p63
        %p140 = pneg %p60
        %p141 = pneg %p89
        %p142 = pneg %p86
        %s143 = sand.u32 %s76, 1
        %s144 = scalar_lea.sflag [#allocation6], %s143
        %s145 = sand.u32 %s76, 1
        %s146 = smul.addr %s145, 8
        %s147 = scalar_lea.vmem [#allocation7], %s146
        %v148 = vld [vmem:[%s2] sm:$0x1]
        %s149 = smul.u32 %s26, 128
        %s150 = sld [smem:[#allocation3 + %s149]]
        %s151 = scalar_lea.vmem [#allocation4], %s150
        %v152 = vld [vmem:[%s151] sm:$0x1]
        %v153 = vadd.f32 %v152, %v148
        %154 = vst [vmem:[%s147] sm:$0x1] %v153
        %s155 = sadd.s32 %s149, 1
        %s156 = sld [smem:[#allocation3 + %s155]]
        %s157 = scalar_lea.vmem [#allocation4], %s156
        %v158 = vld [vmem:[%s157] sm:$0x1]
        %v159 = vadd.f32 %v158, %v148
        %160 = vst [vmem:[%s147 + $0x1] sm:$0x1] %v159
        %s161 = sadd.s32 %s149, 2
        %s162 = sld [smem:[#allocation3 + %s161]]
        %s163 = scalar_lea.vmem [#allocation4], %s162
        %v164 = vld [vmem:[%s163] sm:$0x1]
        %v165 = vadd.f32 %v164, %v148
        %166 = vst [vmem:[%s147 + $0x2] sm:$0x1] %v165
        %s167 = sadd.s32 %s149, 3
        %s168 = sld [smem:[#allocation3 + %s167]]
        %s169 = scalar_lea.vmem [#allocation4], %s168
        %v170 = vld [vmem:[%s169] sm:$0x1]
        %v171 = vadd.f32 %v170, %v148
        %172 = vst [vmem:[%s147 + $0x3] sm:$0x1] %v171
        %s173 = sadd.s32 %s149, 4
        %s174 = sld [smem:[#allocation3 + %s173]]
        %s175 = scalar_lea.vmem [#allocation4], %s174
        %v176 = vld [vmem:[%s175] sm:$0x1]
        %v177 = vadd.f32 %v176, %v148
        %178 = vst [vmem:[%s147 + $0x4] sm:$0x1] %v177
        %s179 = sadd.s32 %s149, 5
        %s180 = sld [smem:[#allocation3 + %s179]]
        %s181 = scalar_lea.vmem [#allocation4], %s180
        %v182 = vld [vmem:[%s181] sm:$0x1]
        %v183 = vadd.f32 %v182, %v148
        %184 = vst [vmem:[%s147 + $0x5] sm:$0x1] %v183
        %s185 = sadd.s32 %s149, 6
        %s186 = sld [smem:[#allocation3 + %s185]]
        %s187 = scalar_lea.vmem [#allocation4], %s186
        %v188 = vld [vmem:[%s187] sm:$0x1]
        %v189 = vadd.f32 %v188, %v148
        %190 = vst [vmem:[%s147 + $0x6] sm:$0x1] %v189
        %s191 = sadd.s32 %s149, 7
        %s192 = sld [smem:[#allocation3 + %s191]]
        %s193 = scalar_lea.vmem [#allocation4], %s192
        %v194 = vld [vmem:[%s193] sm:$0x1]
        %v195 = vadd.f32 %v194, %v148
        %196 = vst [vmem:[%s147 + $0x7] sm:$0x1] %v195
        %s197 = sand.u32 %s76, 1
        %s198 = scalar_lea.sflag [#allocation6], %s197
        %s199 = sand.u32 %s76, 1
        %s200 = smul.addr %s199, 8
        %s201 = scalar_lea.vmem [#allocation7], %s200
        // Predicated region
        $region33: #{tpu_custom_call.1} parent=27 // pred_check
          %p202 = pneg %p86
        $region34: #{tpu_custom_call.1} parent=27 // pred_check_branch
          %204 = sbr.rel (%p202) target = $region36
        $region35: #{tpu_custom_call.1} parent=27 // pred_region
          %206 = vsyncadd %s198, 0
          %s207 = smul.addr %s26, 8
          %s208 = scalar_lea.hbm %s3, %s207
          %s210 = sshll.u32 %s201, 4
          %s211 = int_to_ptr.vmem [resolvable:$true] %s210
          %s212 = sshll.u32 %s208, 4
          %s213 = int_to_ptr.hbm [resolvable:$true] %s212
          %215 = dma.vmem_to_hbm [thread:$0]  %s211, 128, %s213, %s198
        $region36: #{tpu_custom_call.1} parent=27 // pred_fallthru
          _
      $region28: #{tpu_custom_call.1} parent=5 // pred_fallthru
        _
      %p216 = scmp.le.s32.totalorder 2, %s21
      // Predicated region
      $region37: #{tpu_custom_call.1} parent=5 // pred_check
        %p217 = pneg %p216
      $region38: #{tpu_custom_call.1} parent=5 // pred_check_branch
        %219 = sbr.rel (%p217) target = $region40
      $region39: #{tpu_custom_call.1} parent=5 // pred_region
        %s220 = ssub.s32 %s21, 2
        // Predicated region
        $region41: #{tpu_custom_call.1} parent=39 // pred_check
          %p221 = pneg %p92
        $region42: #{tpu_custom_call.1} parent=39 // pred_check_branch
          %223 = sbr.rel (%p221) target = $region44
        $region43: #{tpu_custom_call.1} parent=39 // pred_region
          %s224 = sand.u32 %s77, 1
          %s225 = scalar_lea.sflag [#allocation6], %s224
          %s226 = sand.u32 %s77, 1
          %s227 = smul.addr %s226, 8
          %s228 = scalar_lea.vmem [#allocation7], %s227
          %230 = dma.done %s225, 128
        $region44: #{tpu_custom_call.1} parent=39 // pred_fallthru
          _
      $region40: #{tpu_custom_call.1} parent=5 // pred_fallthru
        _
    $region6: #{tpu_custom_call.1} parent=1 // loop_footer
      %s25 = sadd.s32 1, %s21
    $region7: #{tpu_custom_call.1} parent=1 // loop_footer_branch
      %20 = sbr.rel target = $region3
    $region8: #{tpu_custom_call.1} parent=1 // loop_exit
      _
    %231 = vsyncpa [#allocation5], 1
    %s232 = scalar_lea.sflag [#allocation5], 1
    %233 = vsyncpa %s232, 1
    %234 = vsyncpa [#allocation6], 1
    %s235 = scalar_lea.sflag [#allocation6], 1
    %236 = vsyncpa %s235, 1

</llo_original>
